<compile_context>
chip_gen: v7x
topology: tpu7x:2x2x1
jax: 0.10.0
libtpu: 0.0.40
codegen_flags: <defaults>
</compile_context>

<pallas_src>
import functools
import math

import jax
import jax.numpy as jnp
from jax.experimental import pallas as pl
from jax.experimental.pallas import tpu as pltpu

HIDDEN = 256


def _round_up(n, m):
    return ((n + m - 1) // m) * m


def _policy_kernel(x_ref, w1_ref, b1_ref, w2_ref, b2_ref, w34_ref, b34_ref,
                   mean_ref, var_ref, *, out_dim):
    x = x_ref[...]

    # linear1 + ReLU (bf16 matmul operands, f32 accumulation / epilogue)
    h1 = jnp.dot(x.astype(w1_ref.dtype), w1_ref[...],
                 preferred_element_type=jnp.float32) + b1_ref[...]
    h1 = jnp.maximum(h1, 0.0)

    # linear2 + ReLU
    h2 = jnp.dot(h1.astype(w2_ref.dtype), w2_ref[...],
                 preferred_element_type=jnp.float32) + b2_ref[...]
    h2 = jnp.maximum(h2, 0.0)

    # Fused heads: one lane-dense (HIDDEN, 128) matmul.
    #   columns [0, out_dim)          -> mean (linear3)
    #   columns [out_dim, 2*out_dim)  -> pre-softplus variance logits (linear4)
    #   remaining columns             -> zero padding (never stored)
    y = jnp.dot(h2.astype(w34_ref.dtype), w34_ref[...],
                preferred_element_type=jnp.float32) + b34_ref[...]

    mean_ref[...] = y[:, :out_dim].astype(mean_ref.dtype)

    z = y[:, out_dim:2 * out_dim]
    # numerically stable softplus == torch.nn.functional.softplus (threshold=20) within f32 ulp
    var_ref[...] = (jnp.maximum(z, 0.0)
                    + jnp.log1p(jnp.exp(-jnp.abs(z)))).astype(var_ref.dtype)


def _pick_batch_tile(batch):
    # Small batches: a single grid step, just sublane-align the tile.
    if batch < 256:
        return _round_up(max(batch, 1), 8)
    # Large batches: big tiles (<= 1024 rows) amortize per-step overhead, but the
    # tile is capped at ceil(B/2) so the grid always has >= 2 parallel steps
    # (keeps both v7x TensorCores busy; irrelevant on single-TC v5e/v6e).
    return min(1024, _round_up(pl.cdiv(batch, 2), 8))


@jax.jit
def policy_network_forward(x, params):
    """x: (B, in_dim) f32; params: weights (fan_in, fan_out) (bf16 by default), biases (1, fan_out) f32.

    Returns (mean, variance), each (B, out_dim) f32, matching torch policy_network.forward.
    """
    B, in_dim = x.shape
    hidden = params["w1"].shape[1]
    out_dim = params["w3"].shape[1]
    padn = _round_up(2 * out_dim, 128)           # lane-dense fused-head width

    tb = _pick_batch_tile(B)
    grid = (pl.cdiv(B, tb),)
    # NOTE: no jnp.pad of x — a ragged last tile relies on Pallas OOB block handling
    # (garbage OOB rows produce garbage outputs whose OOB stores are discarded).

    # Fuse + lane-pad the two heads outside the kernel (tiny, one-time per params).
    w34 = jnp.concatenate([params["w3"], params["w4"]], axis=1)
    w34 = jnp.pad(w34, ((0, 0), (0, padn - 2 * out_dim)))
    b34 = jnp.concatenate([params["b3"], params["b4"]], axis=1)
    b34 = jnp.pad(b34, ((0, 0), (0, padn - 2 * out_dim)))

    w_bytes = ((in_dim * hidden + hidden * hidden) * params["w1"].dtype.itemsize
               + hidden * padn * w34.dtype.itemsize)
    cost = pl.CostEstimate(
        flops=2 * B * (in_dim * hidden + hidden * hidden + hidden * padn),
        transcendentals=2 * B * out_dim,
        bytes_accessed=(B * in_dim * 4 + w_bytes + (2 * hidden + padn) * 4
                        + 2 * B * out_dim * 4),
    )

    grid_spec = pltpu.PrefetchScalarGridSpec(
        num_scalar_prefetch=0,
        grid=grid,
        in_specs=[
            pl.BlockSpec((tb, in_dim), lambda i: (i, 0)),        # x batch tile
            pl.BlockSpec((in_dim, hidden), lambda i: (0, 0)),    # w1 (resident)
            pl.BlockSpec((1, hidden), lambda i: (0, 0)),         # b1
            pl.BlockSpec((hidden, hidden), lambda i: (0, 0)),    # w2
            pl.BlockSpec((1, hidden), lambda i: (0, 0)),         # b2
            pl.BlockSpec((hidden, padn), lambda i: (0, 0)),      # fused head weights
            pl.BlockSpec((1, padn), lambda i: (0, 0)),           # fused head bias
        ],
        out_specs=(
            pl.BlockSpec((tb, out_dim), lambda i: (i, 0)),       # mean
            pl.BlockSpec((tb, out_dim), lambda i: (i, 0)),       # variance
        ),
    )

    mean, variance = pl.pallas_call(
        functools.partial(_policy_kernel, out_dim=out_dim),
        out_shape=(jax.ShapeDtypeStruct((B, out_dim), jnp.float32),
                   jax.ShapeDtypeStruct((B, out_dim), jnp.float32)),
        grid_spec=grid_spec,
        compiler_params=pltpu.CompilerParams(dimension_semantics=("parallel",)),
        cost_estimate=cost,
    )(x, params["w1"], params["b1"], params["w2"], params["b2"], w34, b34)

    return mean, variance


def _xavier_uniform(key, fan_in, fan_out, dtype):
    # torch.nn.init.xavier_uniform_ (gain=1); stored (fan_in, fan_out) = transposed vs torch
    a = math.sqrt(6.0 / (fan_in + fan_out))
    return jax.random.uniform(key, (fan_in, fan_out), jnp.float32,
                              minval=-a, maxval=a).astype(dtype)


def _bias_init(key, fan_in, fan_out):
    # torch nn.Linear default bias init: U(-1/sqrt(fan_in), 1/sqrt(fan_in)); kept f32
    bound = 1.0 / math.sqrt(fan_in)
    return jax.random.uniform(key, (1, fan_out), jnp.float32, minval=-bound, maxval=bound)


def init_policy_params(key, in_dim, out_dim, weight_dtype=jnp.bfloat16):
    keys = jax.random.split(key, 8)
    return {
        "w1": _xavier_uniform(keys[0], in_dim, HIDDEN, weight_dtype),
        "b1": _bias_init(keys[1], in_dim, HIDDEN),
        "w2": _xavier_uniform(keys[2], HIDDEN, HIDDEN, weight_dtype),
        "b2": _bias_init(keys[3], HIDDEN, HIDDEN),
        "w3": _xavier_uniform(keys[4], HIDDEN, out_dim, weight_dtype),
        "b3": _bias_init(keys[5], HIDDEN, out_dim),
        "w4": _xavier_uniform(keys[6], HIDDEN, out_dim, weight_dtype),
        "b4": _bias_init(keys[7], HIDDEN, out_dim),
    }


def _reference_forward(x, p):
    # Plain-JAX reference with identical dtype handling (bf16 matmul operands, f32 accum).
    def mm(a, w):
        return jnp.dot(a.astype(w.dtype), w, preferred_element_type=jnp.float32)

    h1 = jnp.maximum(mm(x, p["w1"]) + p["b1"], 0.0)
    h2 = jnp.maximum(mm(h1, p["w2"]) + p["b2"], 0.0)
    mean = mm(h2, p["w3"]) + p["b3"]
    z = mm(h2, p["w4"]) + p["b4"]
    var = jnp.maximum(z, 0.0) + jnp.log1p(jnp.exp(-jnp.abs(z)))
    return mean, var


if __name__ == "__main__":
    key = jax.random.PRNGKey(0)
    k_x, k_p = jax.random.split(key)

    batch, in_dim, out_dim = 8, 16, 4
    x = jax.random.normal(k_x, (batch, in_dim), jnp.float32)
    params = init_policy_params(k_p, in_dim, out_dim)

    mean, var = policy_network_forward(x, params)
    jax.block_until_ready((mean, var))

    mean_ref, var_ref = _reference_forward(x, params)
    assert mean.shape == (batch, out_dim) and var.shape == (batch, out_dim)
    assert jnp.allclose(mean, mean_ref, atol=1e-4, rtol=1e-4)
    assert jnp.allclose(var, var_ref, atol=1e-4, rtol=1e-4)
    assert bool(jnp.all(var >= 0.0))

    print("KERNEL_OK")
</pallas_src>

<mosaic_0001>
module attributes {stable_mosaic.version = 11 : i64} {
  func.func @_policy_kernel(%arg0: i32, %arg1: memref<8x16xf32, #tpu.memory_space<vmem>>, %arg2: memref<16x256xbf16, #tpu.memory_space<vmem>>, %arg3: memref<1x256xf32, #tpu.memory_space<vmem>>, %arg4: memref<256x256xbf16, #tpu.memory_space<vmem>>, %arg5: memref<1x256xf32, #tpu.memory_space<vmem>>, %arg6: memref<256x128xbf16, #tpu.memory_space<vmem>>, %arg7: memref<1x128xf32, #tpu.memory_space<vmem>>, %arg8: memref<8x4xf32, #tpu.memory_space<vmem>>, %arg9: memref<8x4xf32, #tpu.memory_space<vmem>>) attributes {dimension_semantics = [#tpu.dimension_semantics<parallel>], iteration_bounds = array<i64: 1>, scalar_prefetch = 0 : i64, scratch_operands = 0 : i64, tpu.core_type = #tpu.core_type<tc>, window_params = [{transform_indices = @transform_0, window_bounds = array<i64: 8, 16>}, {pipeline_mode = #tpu.pipeline_mode<synchronous>, transform_indices = @transform_1, window_bounds = array<i64: 16, 256>}, {pipeline_mode = #tpu.pipeline_mode<synchronous>, transform_indices = @transform_2, window_bounds = array<i64: 1, 256>}, {pipeline_mode = #tpu.pipeline_mode<synchronous>, transform_indices = @transform_3, window_bounds = array<i64: 256, 256>}, {pipeline_mode = #tpu.pipeline_mode<synchronous>, transform_indices = @transform_4, window_bounds = array<i64: 1, 256>}, {pipeline_mode = #tpu.pipeline_mode<synchronous>, transform_indices = @transform_5, window_bounds = array<i64: 256, 128>}, {pipeline_mode = #tpu.pipeline_mode<synchronous>, transform_indices = @transform_6, window_bounds = array<i64: 1, 128>}, {transform_indices = @transform_7, window_bounds = array<i64: 8, 4>}, {transform_indices = @transform_8, window_bounds = array<i64: 8, 4>}]} {
    %c0 = arith.constant 0 : index
    %c0_0 = arith.constant 0 : index
    %0 = vector.load %arg1[%c0, %c0_0] : memref<8x16xf32, #tpu.memory_space<vmem>>, vector<8x16xf32>
    %1 = arith.truncf %0 : vector<8x16xf32> to vector<8x16xbf16>
    %c0_1 = arith.constant 0 : index
    %c0_2 = arith.constant 0 : index
    %2 = vector.load %arg2[%c0_1, %c0_2] : memref<16x256xbf16, #tpu.memory_space<vmem>>, vector<16x256xbf16>
    %cst = arith.constant dense<0.000000e+00> : vector<8x256xf32>
    %3 = tpu.matmul %1, %2, %cst {dimension_numbers = #tpu.dot_dimension_numbers<[1], [0], [0], [1], [0, 0, 1, 1], [], []>} : vector<8x16xbf16>, vector<16x256xbf16>, vector<8x256xf32> -> vector<8x256xf32>
    %c0_3 = arith.constant 0 : index
    %c0_4 = arith.constant 0 : index
    %4 = vector.load %arg3[%c0_3, %c0_4] : memref<1x256xf32, #tpu.memory_space<vmem>>, vector<1x256xf32>
    %5 = vector.broadcast %4 : vector<1x256xf32> to vector<8x256xf32>
    %6 = arith.addf %3, %5 : vector<8x256xf32>
    %cst_5 = arith.constant 0.000000e+00 : f32
    %7 = vector.broadcast %cst_5 : f32 to vector<8x256xf32>
    %8 = arith.maximumf %6, %7 : vector<8x256xf32>
    %9 = arith.truncf %8 : vector<8x256xf32> to vector<8x256xbf16>
    %c0_6 = arith.constant 0 : index
    %c0_7 = arith.constant 0 : index
    %10 = vector.load %arg4[%c0_6, %c0_7] : memref<256x256xbf16, #tpu.memory_space<vmem>>, vector<256x256xbf16>
    %cst_8 = arith.constant dense<0.000000e+00> : vector<8x256xf32>
    %11 = tpu.matmul %9, %10, %cst_8 {dimension_numbers = #tpu.dot_dimension_numbers<[1], [0], [0], [1], [0, 0, 1, 1], [], []>} : vector<8x256xbf16>, vector<256x256xbf16>, vector<8x256xf32> -> vector<8x256xf32>
    %c0_9 = arith.constant 0 : index
    %c0_10 = arith.constant 0 : index
    %12 = vector.load %arg5[%c0_9, %c0_10] : memref<1x256xf32, #tpu.memory_space<vmem>>, vector<1x256xf32>
    %13 = vector.broadcast %12 : vector<1x256xf32> to vector<8x256xf32>
    %14 = arith.addf %11, %13 : vector<8x256xf32>
    %cst_11 = arith.constant 0.000000e+00 : f32
    %15 = vector.broadcast %cst_11 : f32 to vector<8x256xf32>
    %16 = arith.maximumf %14, %15 : vector<8x256xf32>
    %17 = arith.truncf %16 : vector<8x256xf32> to vector<8x256xbf16>
    %c0_12 = arith.constant 0 : index
    %c0_13 = arith.constant 0 : index
    %18 = vector.load %arg6[%c0_12, %c0_13] : memref<256x128xbf16, #tpu.memory_space<vmem>>, vector<256x128xbf16>
    %cst_14 = arith.constant dense<0.000000e+00> : vector<8x128xf32>
    %19 = tpu.matmul %17, %18, %cst_14 {dimension_numbers = #tpu.dot_dimension_numbers<[1], [0], [0], [1], [0, 0, 1, 1], [], []>} : vector<8x256xbf16>, vector<256x128xbf16>, vector<8x128xf32> -> vector<8x128xf32>
    %c0_15 = arith.constant 0 : index
    %c0_16 = arith.constant 0 : index
    %20 = vector.load %arg7[%c0_15, %c0_16] : memref<1x128xf32, #tpu.memory_space<vmem>>, vector<1x128xf32>
    %21 = vector.broadcast %20 : vector<1x128xf32> to vector<8x128xf32>
    %22 = arith.addf %19, %21 : vector<8x128xf32>
    %23 = vector.extract_strided_slice %22 {offsets = [0, 0], sizes = [8, 4], strides = [1, 1]} : vector<8x128xf32> to vector<8x4xf32>
    %c0_17 = arith.constant 0 : index
    %c0_18 = arith.constant 0 : index
    %24 = vector.load %arg8[%c0_17, %c0_18] : memref<8x4xf32, #tpu.memory_space<vmem>>, vector<8x4xf32>
    tpu.vector_store %arg8[%c0_17, %c0_18], %23 {strides = array<i32>} : memref<8x4xf32, #tpu.memory_space<vmem>>, vector<8x4xf32>,
    %25 = vector.extract_strided_slice %22 {offsets = [0, 4], sizes = [8, 4], strides = [1, 1]} : vector<8x128xf32> to vector<8x4xf32>
    %cst_19 = arith.constant 0.000000e+00 : f32
    %26 = vector.broadcast %cst_19 : f32 to vector<8x4xf32>
    %27 = arith.maximumf %25, %26 : vector<8x4xf32>
    %28 = math.absf %25 : vector<8x4xf32>
    %cst_20 = arith.constant 0.000000e+00 : f32
    %29 = vector.broadcast %cst_20 : f32 to vector<8x4xf32>
    %30 = arith.subf %29, %28 : vector<8x4xf32>
    %31 = math.exp %30 : vector<8x4xf32>
    %32 = math.log1p %31 : vector<8x4xf32>
    %33 = arith.addf %27, %32 : vector<8x4xf32>
    %c0_21 = arith.constant 0 : index
    %c0_22 = arith.constant 0 : index
    %34 = vector.load %arg9[%c0_21, %c0_22] : memref<8x4xf32, #tpu.memory_space<vmem>>, vector<8x4xf32>
    tpu.vector_store %arg9[%c0_21, %c0_22], %33 {strides = array<i32>} : memref<8x4xf32, #tpu.memory_space<vmem>>, vector<8x4xf32>,
    return
  }
  func.func @transform_0(%arg0: i32) -> (i32, i32) {
    %c0_i32 = arith.constant 0 : i32
    %c0_i32_0 = arith.constant 0 : i32
    return %arg0, %c0_i32 : i32, i32
  }
  func.func @transform_1(%arg0: i32) -> (i32, i32) {
    %c0_i32 = arith.constant 0 : i32
    %c0_i32_0 = arith.constant 0 : i32
    %c0_i32_1 = arith.constant 0 : i32
    return %c0_i32, %c0_i32_0 : i32, i32
  }
  func.func @transform_2(%arg0: i32) -> (i32, i32) {
    %c0_i32 = arith.constant 0 : i32
    %c0_i32_0 = arith.constant 0 : i32
    %c0_i32_1 = arith.constant 0 : i32
    return %c0_i32, %c0_i32_0 : i32, i32
  }
  func.func @transform_3(%arg0: i32) -> (i32, i32) {
    %c0_i32 = arith.constant 0 : i32
    %c0_i32_0 = arith.constant 0 : i32
    %c0_i32_1 = arith.constant 0 : i32
    return %c0_i32, %c0_i32_0 : i32, i32
  }
  func.func @transform_4(%arg0: i32) -> (i32, i32) {
    %c0_i32 = arith.constant 0 : i32
    %c0_i32_0 = arith.constant 0 : i32
    %c0_i32_1 = arith.constant 0 : i32
    return %c0_i32, %c0_i32_0 : i32, i32
  }
  func.func @transform_5(%arg0: i32) -> (i32, i32) {
    %c0_i32 = arith.constant 0 : i32
    %c0_i32_0 = arith.constant 0 : i32
    %c0_i32_1 = arith.constant 0 : i32
    return %c0_i32, %c0_i32_0 : i32, i32
  }
  func.func @transform_6(%arg0: i32) -> (i32, i32) {
    %c0_i32 = arith.constant 0 : i32
    %c0_i32_0 = arith.constant 0 : i32
    %c0_i32_1 = arith.constant 0 : i32
    return %c0_i32, %c0_i32_0 : i32, i32
  }
  func.func @transform_7(%arg0: i32) -> (i32, i32) {
    %c0_i32 = arith.constant 0 : i32
    %c0_i32_0 = arith.constant 0 : i32
    return %arg0, %c0_i32 : i32, i32
  }
  func.func @transform_8(%arg0: i32) -> (i32, i32) {
    %c0_i32 = arith.constant 0 : i32
    %c0_i32_0 = arith.constant 0 : i32
    return %arg0, %c0_i32 : i32, i32
  }
}

</mosaic_0001>

<llo_original>
// kernel: policy_network_forward.1
$region0: #{policy_network_forward.1}
  #allocation0 [shape = 'u32[]', space=smem, size = 0x4, offset = 0x4, fixed_abs, tag = 'smem constant byte address 0x4 - core index']
  #allocation1 [shape = 'u32[144,128]{1,0:T(1,128)}', space=vmem, size = 0x12000, scoped, tag = 'internal scratch']
  %s0 = inlined_call_operand.vmem [shape: f32[8,16], index: 0, kind: input, shape index: {}]
  %s1 = inlined_call_operand.vmem [shape: bf16[16,256], index: 1, kind: input, shape index: {}]
  %s2 = inlined_call_operand.vmem [shape: f32[1,256], index: 2, kind: input, shape index: {}]
  %s3 = inlined_call_operand.vmem [shape: bf16[256,256], index: 3, kind: input, shape index: {}]
  %s4 = inlined_call_operand.vmem [shape: f32[1,256], index: 4, kind: input, shape index: {}]
  %s5 = inlined_call_operand.vmem [shape: bf16[256,128], index: 5, kind: input, shape index: {}]
  %s6 = inlined_call_operand.vmem [shape: f32[1,128], index: 6, kind: input, shape index: {}]
  %s7 = inlined_call_operand.vmem [shape: f32[8,4], index: 7, kind: output, shape index: {0}]
  %s8 = inlined_call_operand.vmem [shape: f32[8,4], index: 8, kind: output, shape index: {1}]
  %9 = xla_tuple %s7, %s8
  %s10 = sld [smem:[#allocation0]]
  $region46: #{policy_network_forward.1} parent=0
    _
  %s12 = ssub.s32 1, %s10
  %s13 = scalar_select 0, %s12, %s10
  // Predicated region
  $region2: #{policy_network_forward.1} parent=0 // pred_check
    _
  $region3: #{policy_network_forward.1} parent=0 // pred_check_branch
    %15 = sbr.rel (0) target = $region5
  $region4: #{policy_network_forward.1} parent=0 // pred_region
    _
  $region5: #{policy_network_forward.1} parent=0 // pred_fallthru
    _
  // Predicated region
  $region6: #{policy_network_forward.1} parent=0 // pred_check
    _
  $region7: #{policy_network_forward.1} parent=0 // pred_check_branch
    %17 = sbr.rel (0) target = $region9
  $region8: #{policy_network_forward.1} parent=0 // pred_region
    _
  $region9: #{policy_network_forward.1} parent=0 // pred_fallthru
    _
  // Predicated region
  $region10: #{policy_network_forward.1} parent=0 // pred_check
    _
  $region11: #{policy_network_forward.1} parent=0 // pred_check_branch
    %19 = sbr.rel (0) target = $region13
  $region12: #{policy_network_forward.1} parent=0 // pred_region
    _
  $region13: #{policy_network_forward.1} parent=0 // pred_fallthru
    _
  // Predicated region
  $region14: #{policy_network_forward.1} parent=0 // pred_check
    _
  $region15: #{policy_network_forward.1} parent=0 // pred_check_branch
    %21 = sbr.rel (0) target = $region17
  $region16: #{policy_network_forward.1} parent=0 // pred_region
    _
  $region17: #{policy_network_forward.1} parent=0 // pred_fallthru
    _
  // Predicated region
  $region18: #{policy_network_forward.1} parent=0 // pred_check
    _
  $region19: #{policy_network_forward.1} parent=0 // pred_check_branch
    %23 = sbr.rel (0) target = $region21
  $region20: #{policy_network_forward.1} parent=0 // pred_region
    _
  $region21: #{policy_network_forward.1} parent=0 // pred_fallthru
    _
  // Predicated region
  $region22: #{policy_network_forward.1} parent=0 // pred_check
    _
  $region23: #{policy_network_forward.1} parent=0 // pred_check_branch
    %25 = sbr.rel (0) target = $region25
  $region24: #{policy_network_forward.1} parent=0 // pred_region
    _
  $region25: #{policy_network_forward.1} parent=0 // pred_fallthru
    _
  // Predicated region
  $region26: #{policy_network_forward.1} parent=0 // pred_check
    _
  $region27: #{policy_network_forward.1} parent=0 // pred_check_branch
    %27 = sbr.rel (0) target = $region29
  $region28: #{policy_network_forward.1} parent=0 // pred_region
    _
  $region29: #{policy_network_forward.1} parent=0 // pred_fallthru
    _
  %v29 = vld [vmem:[%s0] sm:$0xff]
  %v30 = vpack.c.bf16 %v29, %v29
  %v31 = vld [vmem:[%s1] sm:$0xff]
  %v32 = vld [vmem:[%s1 + $0x8] sm:$0xff]
  %v33 = vld [vmem:[%s2] sm:$0x3]
  %v35 = vlaneseq
  %v36 = vshrl.u32 %v35, 7
  %v37 = vsub.s32 0, %v36
  %v38 = vrot.slane %v33, %v37
  %v39 = vlaneseq
  %v40 = vshrl.u32 %v39, 7
  %v41 = vsub.s32 1, %v40
  %v42 = vrot.slane %v33, %v41
  %v47 = vunpack.c.l.b16 %v31
  %v48 = vunpack.c.h.b16 %v31
  %v49 = vunpack.c.l.b16 %v32
  %v50 = vunpack.c.h.b16 %v32
  %v51 = vpack.c.b16 %v49, %v47
  %v52 = vpack.c.b16 %v50, %v48
  %vm55 = vcmask 130048
  %v57 = vsel %vm55, %v30, 0
  %59 = vmatprep.subr.bf16.mxu0 %v52
  %60 = vmatpush1.bf16.msra.mxu0 %v51
  %61 = vmatprep.subr.bf16.mxu0 0
  %62 = vmatpush1.bf16.msra.mxu0 0
  %63 = vmatprep.subr.bf16.mxu0 0
  %64 = vmatpush1.bf16.msra.mxu0 0
  %65 = vmatprep.subr.bf16.mxu0 0
  %66 = vmatpush1.bf16.msra.mxu0 0
  %67 = vmatprep.subr.bf16.mxu0 0
  %68 = vmatpush1.bf16.msra.mxu0 0
  %69 = vmatprep.subr.bf16.mxu0 0
  %70 = vmatpush1.bf16.msra.mxu0 0
  %71 = vmatprep.subr.bf16.mxu0 0
  %72 = vmatpush1.bf16.msra.mxu0 0
  %73 = vmatprep.subr.bf16.mxu0 0
  %74 = vmatpush1.bf16.msra.mxu0 0
  %75 = vmatprep.subr.bf16.mxu0 0
  %76 = vmatpush1.bf16.msra.mxu0 0
  %77 = vmatprep.subr.bf16.mxu0 0
  %78 = vmatpush1.bf16.msra.mxu0 0
  %79 = vmatprep.subr.bf16.mxu0 0
  %80 = vmatpush1.bf16.msra.mxu0 0
  %81 = vmatprep.subr.bf16.mxu0 0
  %82 = vmatpush1.bf16.msra.mxu0 0
  %83 = vmatprep.subr.bf16.mxu0 0
  %84 = vmatpush1.bf16.msra.mxu0 0
  %85 = vmatprep.subr.bf16.mxu0 0
  %86 = vmatpush1.bf16.msra.mxu0 0
  %87 = vmatprep.subr.bf16.mxu0 0
  %88 = vmatpush1.bf16.msra.mxu0 0
  %89 = vmatprep.subr.bf16.mxu0 0
  %90 = vmatpush1.bf16.msra.mxu0 0
  %91 = vmatprep.mubr.bf16.mxu0 0
  %92 = vmatmul.mubr.bf16.gmra.mrb[0].mxu0 %v57
  %v93 = vpop.f32.mrb[0].mxu0
  %v94 = vadd.f32 %v38, %v93
  %v95 = vpop.f32.mrb[0].mxu0
  %v96 = vadd.f32 %v42, %v95
  %v97 = vpop.f32.mrb[0].mxu0
  %v98 = vpop.f32.mrb[0].mxu0
  %99 = vdwg.mxu0
  %v100 = vmax.f32 %v94, 0.0
  %v101 = vmax.f32 %v96, 0.0
  %v102 = vpack.c.bf16 %v100, %v100
  %v103 = vpack.c.bf16 %v101, %v101
  %v104 = vld [vmem:[%s3] sm:$0xff]
  %v105 = vld [vmem:[%s3 + $0x8] sm:$0xff]
  %v106 = vld [vmem:[%s3 + $0x10] sm:$0xff]
  %v107 = vld [vmem:[%s3 + $0x18] sm:$0xff]
  %v108 = vld [vmem:[%s3 + $0x20] sm:$0xff]
  %v109 = vld [vmem:[%s3 + $0x28] sm:$0xff]
  %v110 = vld [vmem:[%s3 + $0x30] sm:$0xff]
  %v111 = vld [vmem:[%s3 + $0x38] sm:$0xff]
  %v112 = vld [vmem:[%s3 + $0x40] sm:$0xff]
  %v113 = vld [vmem:[%s3 + $0x48] sm:$0xff]
  %v114 = vld [vmem:[%s3 + $0x50] sm:$0xff]
  %v115 = vld [vmem:[%s3 + $0x58] sm:$0xff]
  %v116 = vld [vmem:[%s3 + $0x60] sm:$0xff]
  %v117 = vld [vmem:[%s3 + $0x68] sm:$0xff]
  %v118 = vld [vmem:[%s3 + $0x70] sm:$0xff]
  %v119 = vld [vmem:[%s3 + $0x78] sm:$0xff]
  %v120 = vld [vmem:[%s3 + $0x80] sm:$0xff]
  %v121 = vld [vmem:[%s3 + $0x88] sm:$0xff]
  %v122 = vld [vmem:[%s3 + $0x90] sm:$0xff]
  %v123 = vld [vmem:[%s3 + $0x98] sm:$0xff]
  %v124 = vld [vmem:[%s3 + $0xa0] sm:$0xff]
  %v125 = vld [vmem:[%s3 + $0xa8] sm:$0xff]
  %v126 = vld [vmem:[%s3 + $0xb0] sm:$0xff]
  %v127 = vld [vmem:[%s3 + $0xb8] sm:$0xff]
  %v128 = vld [vmem:[%s3 + $0xc0] sm:$0xff]
  %v129 = vld [vmem:[%s3 + $0xc8] sm:$0xff]
  %v130 = vld [vmem:[%s3 + $0xd0] sm:$0xff]
  %v131 = vld [vmem:[%s3 + $0xd8] sm:$0xff]
  %v132 = vld [vmem:[%s3 + $0xe0] sm:$0xff]
  %v133 = vld [vmem:[%s3 + $0xe8] sm:$0xff]
  %v134 = vld [vmem:[%s3 + $0xf0] sm:$0xff]
  %v135 = vld [vmem:[%s3 + $0xf8] sm:$0xff]
  %v136 = vld [vmem:[%s4] sm:$0x3]
  %v138 = vlaneseq
  %v139 = vshrl.u32 %v138, 7
  %v140 = vsub.s32 0, %v139
  %v141 = vrot.slane %v136, %v140
  %v142 = vlaneseq
  %v143 = vshrl.u32 %v142, 7
  %v144 = vsub.s32 1, %v143
  %v145 = vrot.slane %v136, %v144
  %v180 = vunpack.c.l.b16 %v104
  %v181 = vunpack.c.h.b16 %v104
  %v182 = vunpack.c.l.b16 %v105
  %v183 = vunpack.c.h.b16 %v105
  %v184 = vunpack.c.l.b16 %v106
  %v185 = vunpack.c.h.b16 %v106
  %v186 = vunpack.c.l.b16 %v107
  %v187 = vunpack.c.h.b16 %v107
  %v188 = vunpack.c.l.b16 %v108
  %v189 = vunpack.c.h.b16 %v108
  %v190 = vunpack.c.l.b16 %v109
  %v191 = vunpack.c.h.b16 %v109
  %v192 = vunpack.c.l.b16 %v110
  %v193 = vunpack.c.h.b16 %v110
  %v194 = vunpack.c.l.b16 %v111
  %v195 = vunpack.c.h.b16 %v111
  %v196 = vunpack.c.l.b16 %v112
  %v197 = vunpack.c.h.b16 %v112
  %v198 = vunpack.c.l.b16 %v113
  %v199 = vunpack.c.h.b16 %v113
  %v200 = vunpack.c.l.b16 %v114
  %v201 = vunpack.c.h.b16 %v114
  %v202 = vunpack.c.l.b16 %v115
  %v203 = vunpack.c.h.b16 %v115
  %v204 = vunpack.c.l.b16 %v116
  %v205 = vunpack.c.h.b16 %v116
  %v206 = vunpack.c.l.b16 %v117
  %v207 = vunpack.c.h.b16 %v117
  %v208 = vunpack.c.l.b16 %v118
  %v209 = vunpack.c.h.b16 %v118
  %v210 = vunpack.c.l.b16 %v119
  %v211 = vunpack.c.h.b16 %v119
  %v212 = vunpack.c.l.b16 %v120
  %v213 = vunpack.c.h.b16 %v120
  %v214 = vunpack.c.l.b16 %v121
  %v215 = vunpack.c.h.b16 %v121
  %v216 = vunpack.c.l.b16 %v122
  %v217 = vunpack.c.h.b16 %v122
  %v218 = vunpack.c.l.b16 %v123
  %v219 = vunpack.c.h.b16 %v123
  %v220 = vunpack.c.l.b16 %v124
  %v221 = vunpack.c.h.b16 %v124
  %v222 = vunpack.c.l.b16 %v125
  %v223 = vunpack.c.h.b16 %v125
  %v224 = vunpack.c.l.b16 %v126
  %v225 = vunpack.c.h.b16 %v126
  %v226 = vunpack.c.l.b16 %v127
  %v227 = vunpack.c.h.b16 %v127
  %v228 = vunpack.c.l.b16 %v128
  %v229 = vunpack.c.h.b16 %v128
  %v230 = vunpack.c.l.b16 %v129
  %v231 = vunpack.c.h.b16 %v129
  %v232 = vunpack.c.l.b16 %v130
  %v233 = vunpack.c.h.b16 %v130
  %v234 = vunpack.c.l.b16 %v131
  %v235 = vunpack.c.h.b16 %v131
  %v236 = vunpack.c.l.b16 %v132
  %v237 = vunpack.c.h.b16 %v132
  %v238 = vunpack.c.l.b16 %v133
  %v239 = vunpack.c.h.b16 %v133
  %v240 = vunpack.c.l.b16 %v134
  %v241 = vunpack.c.h.b16 %v134
  %v242 = vunpack.c.l.b16 %v135
  %v243 = vunpack.c.h.b16 %v135
  %v244 = vpack.c.b16 %v182, %v180
  %v245 = vpack.c.b16 %v183, %v181
  %v246 = vpack.c.b16 %v186, %v184
  %v247 = vpack.c.b16 %v187, %v185
  %v248 = vpack.c.b16 %v190, %v188
  %v249 = vpack.c.b16 %v191, %v189
  %v250 = vpack.c.b16 %v194, %v192
  %v251 = vpack.c.b16 %v195, %v193
  %v252 = vpack.c.b16 %v198, %v196
  %v253 = vpack.c.b16 %v199, %v197
  %v254 = vpack.c.b16 %v202, %v200
  %v255 = vpack.c.b16 %v203, %v201
  %v256 = vpack.c.b16 %v206, %v204
  %v257 = vpack.c.b16 %v207, %v205
  %v258 = vpack.c.b16 %v210, %v208
  %v259 = vpack.c.b16 %v211, %v209
  %v260 = vpack.c.b16 %v214, %v212
  %v261 = vpack.c.b16 %v215, %v213
  %v262 = vpack.c.b16 %v218, %v216
  %v263 = vpack.c.b16 %v219, %v217
  %v264 = vpack.c.b16 %v222, %v220
  %v265 = vpack.c.b16 %v223, %v221
  %v266 = vpack.c.b16 %v226, %v224
  %v267 = vpack.c.b16 %v227, %v225
  %v268 = vpack.c.b16 %v230, %v228
  %v269 = vpack.c.b16 %v231, %v229
  %v270 = vpack.c.b16 %v234, %v232
  %v271 = vpack.c.b16 %v235, %v233
  %v272 = vpack.c.b16 %v238, %v236
  %v273 = vpack.c.b16 %v239, %v237
  %v274 = vpack.c.b16 %v242, %v240
  %v275 = vpack.c.b16 %v243, %v241
  %308 = vmatprep.subr.bf16.mxu0 %v245
  %309 = vmatpush1.bf16.msra.mxu0 %v244
  %310 = vmatprep.subr.bf16.mxu0 %v247
  %311 = vmatpush1.bf16.msra.mxu0 %v246
  %312 = vmatprep.subr.bf16.mxu0 %v249
  %313 = vmatpush1.bf16.msra.mxu0 %v248
  %314 = vmatprep.subr.bf16.mxu0 %v251
  %315 = vmatpush1.bf16.msra.mxu0 %v250
  %316 = vmatprep.subr.bf16.mxu0 %v253
  %317 = vmatpush1.bf16.msra.mxu0 %v252
  %318 = vmatprep.subr.bf16.mxu0 %v255
  %319 = vmatpush1.bf16.msra.mxu0 %v254
  %320 = vmatprep.subr.bf16.mxu0 %v257
  %321 = vmatpush1.bf16.msra.mxu0 %v256
  %322 = vmatprep.subr.bf16.mxu0 %v259
  %323 = vmatpush1.bf16.msra.mxu0 %v258
  %324 = vmatprep.subr.bf16.mxu0 %v261
  %325 = vmatpush1.bf16.msra.mxu0 %v260
  %326 = vmatprep.subr.bf16.mxu0 %v263
  %327 = vmatpush1.bf16.msra.mxu0 %v262
  %328 = vmatprep.subr.bf16.mxu0 %v265
  %329 = vmatpush1.bf16.msra.mxu0 %v264
  %330 = vmatprep.subr.bf16.mxu0 %v267
  %331 = vmatpush1.bf16.msra.mxu0 %v266
  %332 = vmatprep.subr.bf16.mxu0 %v269
  %333 = vmatpush1.bf16.msra.mxu0 %v268
  %334 = vmatprep.subr.bf16.mxu0 %v271
  %335 = vmatpush1.bf16.msra.mxu0 %v270
  %336 = vmatprep.subr.bf16.mxu0 %v273
  %337 = vmatpush1.bf16.msra.mxu0 %v272
  %338 = vmatprep.subr.bf16.mxu0 %v275
  %339 = vmatpush1.bf16.msra.mxu0 %v274
  %340 = vmatprep.mubr.bf16.mxu0 %v103
  %341 = vmatmul.mubr.bf16.gmra.mrb[0].mxu0 %v102
  %v342 = vpop.f32.mrb[0].mxu0
  %v343 = vadd.f32 %v141, %v342
  %v344 = vpop.f32.mrb[0].mxu0
  %v345 = vadd.f32 %v145, %v344
  %v346 = vpop.f32.mrb[0].mxu0
  %v347 = vpop.f32.mrb[0].mxu0
  %348 = vdwg.mxu0
  %v349 = vmax.f32 %v343, 0.0
  %v350 = vmax.f32 %v345, 0.0
  %v351 = vpack.c.bf16 %v349, %v349
  %v352 = vpack.c.bf16 %v350, %v350
  %v353 = vld [vmem:[%s5] sm:$0xf]
  %v354 = vld [vmem:[%s5 + $0x4] sm:$0xf]
  %v355 = vld [vmem:[%s5 + $0x8] sm:$0xf]
  %v356 = vld [vmem:[%s5 + $0xc] sm:$0xf]
  %v357 = vld [vmem:[%s5 + $0x10] sm:$0xf]
  %v358 = vld [vmem:[%s5 + $0x14] sm:$0xf]
  %v359 = vld [vmem:[%s5 + $0x18] sm:$0xf]
  %v360 = vld [vmem:[%s5 + $0x1c] sm:$0xf]
  %v361 = vld [vmem:[%s5 + $0x20] sm:$0xf]
  %v362 = vld [vmem:[%s5 + $0x24] sm:$0xf]
  %v363 = vld [vmem:[%s5 + $0x28] sm:$0xf]
  %v364 = vld [vmem:[%s5 + $0x2c] sm:$0xf]
  %v365 = vld [vmem:[%s5 + $0x30] sm:$0xf]
  %v366 = vld [vmem:[%s5 + $0x34] sm:$0xf]
  %v367 = vld [vmem:[%s5 + $0x38] sm:$0xf]
  %v368 = vld [vmem:[%s5 + $0x3c] sm:$0xf]
  %v369 = vld [vmem:[%s5 + $0x40] sm:$0xf]
  %v370 = vld [vmem:[%s5 + $0x44] sm:$0xf]
  %v371 = vld [vmem:[%s5 + $0x48] sm:$0xf]
  %v372 = vld [vmem:[%s5 + $0x4c] sm:$0xf]
  %v373 = vld [vmem:[%s5 + $0x50] sm:$0xf]
  %v374 = vld [vmem:[%s5 + $0x54] sm:$0xf]
  %v375 = vld [vmem:[%s5 + $0x58] sm:$0xf]
  %v376 = vld [vmem:[%s5 + $0x5c] sm:$0xf]
  %v377 = vld [vmem:[%s5 + $0x60] sm:$0xf]
  %v378 = vld [vmem:[%s5 + $0x64] sm:$0xf]
  %v379 = vld [vmem:[%s5 + $0x68] sm:$0xf]
  %v380 = vld [vmem:[%s5 + $0x6c] sm:$0xf]
  %v381 = vld [vmem:[%s5 + $0x70] sm:$0xf]
  %v382 = vld [vmem:[%s5 + $0x74] sm:$0xf]
  %v383 = vld [vmem:[%s5 + $0x78] sm:$0xf]
  %v384 = vld [vmem:[%s5 + $0x7c] sm:$0xf]
  %v385 = vld [vmem:[%s6] sm:$0x1]
  %v387 = vlaneseq
  %v388 = vshrl.u32 %v387, 7
  %v389 = vsub.s32 0, %v388
  %v390 = vrot.slane %v385, %v389
  %v424 = vunpack.c.l.b16 %v353
  %v425 = vunpack.c.l.b16 %v354
  %v426 = vunpack.c.l.b16 %v355
  %v427 = vunpack.c.l.b16 %v356
  %v428 = vunpack.c.l.b16 %v357
  %v429 = vunpack.c.l.b16 %v358
  %v430 = vunpack.c.l.b16 %v359
  %v431 = vunpack.c.l.b16 %v360
  %v432 = vunpack.c.l.b16 %v361
  %v433 = vunpack.c.l.b16 %v362
  %v434 = vunpack.c.l.b16 %v363
  %v435 = vunpack.c.l.b16 %v364
  %v436 = vunpack.c.l.b16 %v365
  %v437 = vunpack.c.l.b16 %v366
  %v438 = vunpack.c.l.b16 %v367
  %v439 = vunpack.c.l.b16 %v368
  %v440 = vunpack.c.l.b16 %v369
  %v441 = vunpack.c.l.b16 %v370
  %v442 = vunpack.c.l.b16 %v371
  %v443 = vunpack.c.l.b16 %v372
  %v444 = vunpack.c.l.b16 %v373
  %v445 = vunpack.c.l.b16 %v374
  %v446 = vunpack.c.l.b16 %v375
  %v447 = vunpack.c.l.b16 %v376
  %v448 = vunpack.c.l.b16 %v377
  %v449 = vunpack.c.l.b16 %v378
  %v450 = vunpack.c.l.b16 %v379
  %v451 = vunpack.c.l.b16 %v380
  %v452 = vunpack.c.l.b16 %v381
  %v453 = vunpack.c.l.b16 %v382
  %v454 = vunpack.c.l.b16 %v383
  %v455 = vunpack.c.l.b16 %v384
  %v456 = vpack.c.b16 %v425, %v424
  %v457 = vpack.c.b16 %v427, %v426
  %v458 = vpack.c.b16 %v429, %v428
  %v459 = vpack.c.b16 %v431, %v430
  %v460 = vpack.c.b16 %v433, %v432
  %v461 = vpack.c.b16 %v435, %v434
  %v462 = vpack.c.b16 %v437, %v436
  %v463 = vpack.c.b16 %v439, %v438
  %v464 = vpack.c.b16 %v441, %v440
  %v465 = vpack.c.b16 %v443, %v442
  %v466 = vpack.c.b16 %v445, %v444
  %v467 = vpack.c.b16 %v447, %v446
  %v468 = vpack.c.b16 %v449, %v448
  %v469 = vpack.c.b16 %v451, %v450
  %v470 = vpack.c.b16 %v453, %v452
  %v471 = vpack.c.b16 %v455, %v454
  %488 = vmatprep.subr.bf16.mxu0 0
  %489 = vmatpush1.bf16.msra.mxu0 %v456
  %490 = vmatprep.subr.bf16.mxu0 0
  %491 = vmatpush1.bf16.msra.mxu0 %v457
  %492 = vmatprep.subr.bf16.mxu0 0
  %493 = vmatpush1.bf16.msra.mxu0 %v458
  %494 = vmatprep.subr.bf16.mxu0 0
  %495 = vmatpush1.bf16.msra.mxu0 %v459
  %496 = vmatprep.subr.bf16.mxu0 0
  %497 = vmatpush1.bf16.msra.mxu0 %v460
  %498 = vmatprep.subr.bf16.mxu0 0
  %499 = vmatpush1.bf16.msra.mxu0 %v461
  %500 = vmatprep.subr.bf16.mxu0 0
  %501 = vmatpush1.bf16.msra.mxu0 %v462
  %502 = vmatprep.subr.bf16.mxu0 0
  %503 = vmatpush1.bf16.msra.mxu0 %v463
  %504 = vmatprep.subr.bf16.mxu0 0
  %505 = vmatpush1.bf16.msra.mxu0 %v464
  %506 = vmatprep.subr.bf16.mxu0 0
  %507 = vmatpush1.bf16.msra.mxu0 %v465
  %508 = vmatprep.subr.bf16.mxu0 0
  %509 = vmatpush1.bf16.msra.mxu0 %v466
  %510 = vmatprep.subr.bf16.mxu0 0
  %511 = vmatpush1.bf16.msra.mxu0 %v467
  %512 = vmatprep.subr.bf16.mxu0 0
  %513 = vmatpush1.bf16.msra.mxu0 %v468
  %514 = vmatprep.subr.bf16.mxu0 0
  %515 = vmatpush1.bf16.msra.mxu0 %v469
  %516 = vmatprep.subr.bf16.mxu0 0
  %517 = vmatpush1.bf16.msra.mxu0 %v470
  %518 = vmatprep.subr.bf16.mxu0 0
  %519 = vmatpush1.bf16.msra.mxu0 %v471
  %520 = vmatprep.mubr.bf16.mxu0 %v352
  %521 = vmatmul.mubr.bf16.gmra.mrb[0].mxu0 %v351
  %v522 = vpop.f32.mrb[0].mxu0
  %v523 = vadd.f32 %v390, %v522
  %v524 = vpop.f32.mrb[0].mxu0
  %v525 = vpop.f32.mrb[0].mxu0
  %v526 = vpop.f32.mrb[0].mxu0
  %527 = vdwg.mxu0
  %vm528 = vcmask 31744
  %529 = vst.msk [vmem:[%s7] sm:$0xff] %vm528, %v523
  %v530 = vmax.f32 %v523, 0.0
  %v531 = vand.u32 2147483647, %v523
  %v532 = vsub.f32 0.0, %v531
  %v533 = vmul.f32 %v532, 1.442695
  %v534 = vpow.pop %v533
  %v535 = vadd.f32 %v534, 1.0
  %v536 = vlog2.pop %v535
  %v537 = vmul.f32 %v536, 0.6931472
  %v538 = vmul.f32 -0.5, %v534
  %v539 = vadd.f32 %v538, 1.0
  %v540 = vmul.f32 %v539, %v534
  %v541 = vand.u32 2147483647, %v534
  %vm542 = vcmp.lt.f32.partialorder %v541, 0.0004427343
  %v543 = vsel %vm542, %v540, %v537
  %v544 = vadd.f32 %v530, %v543
  %546 = vrot.lane.b32.xlu0 %v544, 124
  %v547 = vpop.permute.xlu0 %546
  %549 = vst.msk [vmem:[%s8] sm:$0xff] %vm528, %v547
  // Predicated region
  $region30: #{policy_network_forward.1} parent=0 // pred_check
    _
  $region31: #{policy_network_forward.1} parent=0 // pred_check_branch
    %551 = sbr.rel (0) target = $region33
  $region32: #{policy_network_forward.1} parent=0 // pred_region
    _
  $region33: #{policy_network_forward.1} parent=0 // pred_fallthru
    _
  // Predicated region
  $region34: #{policy_network_forward.1} parent=0 // pred_check
    _
  $region35: #{policy_network_forward.1} parent=0 // pred_check_branch
    %553 = sbr.rel (0) target = $region37
  $region36: #{policy_network_forward.1} parent=0 // pred_region
    _
  $region37: #{policy_network_forward.1} parent=0 // pred_fallthru
    _
  // Predicated region
  $region38: #{policy_network_forward.1} parent=0 // pred_check
    _
  $region39: #{policy_network_forward.1} parent=0 // pred_check_branch
    %555 = sbr.rel (0) target = $region41
  $region40: #{policy_network_forward.1} parent=0 // pred_region
    _
  $region41: #{policy_network_forward.1} parent=0 // pred_fallthru
    _
  // Predicated region
  $region42: #{policy_network_forward.1} parent=0 // pred_check
    _
  $region43: #{policy_network_forward.1} parent=0 // pred_check_branch
    %557 = sbr.rel (0) target = $region45
  $region44: #{policy_network_forward.1} parent=0 // pred_region
    _
  $region45: #{policy_network_forward.1} parent=0 // pred_fallthru
    _

</llo_original>
